<compile_context>
chip_gen: v5e
topology: v5e:2x2
jax: 0.10.0
libtpu: 0.0.40
codegen_flags: <defaults>
</compile_context>

<pallas_src>
import jax
import jax.numpy as jnp
from jax.experimental import pallas as pl
from jax.experimental.pallas import tpu as pltpu

NEG_SLOPE = 0.01  # nn.LeakyReLU default


def _leaky_relu(x):
    return jnp.where(x > 0, x, NEG_SLOPE * x)


def _round_up(x, m):
    return ((x + m - 1) // m) * m


def _choose_tiles(n):
    """Return (padded N, row tile TM, reduction tile TK)."""
    n_pad = _round_up(n, 128)
    if n_pad <= 256:
        # Small graph: single tile along rows and along the reduction.
        return n_pad, n_pad, n_pad
    # Larger graphs: 256 x 512 bf16 A tiles (256 KiB each, x2 double buffer).
    n_pad = _round_up(n_pad, 512)           # divisible by both TM and TK
    return n_pad, 256, 512


def aggregator_kernel(a_ref, xk_ref, xm_ref, w1_ref, b1_ref, w2_ref, b2_ref,
                      o_ref, h_acc):
    k = pl.program_id(1)

    @pl.when(k == 0)
    def _init():
        h_acc[...] = jnp.zeros_like(h_acc)

    # Partial message passing for this row tile:
    #   H[i-tile] += A[i-tile, k-tile] @ X[k-tile]   (bf16 MXU, f32 accumulate)
    h_acc[...] += jnp.dot(a_ref[...], xk_ref[...],
                          preferred_element_type=jnp.float32)

    @pl.when(k == pl.num_programs(1) - 1)
    def _finalize():
        h = h_acc[...]                                 # [TM, in_pad] f32
        x_m = xm_ref[...].astype(jnp.float32)          # [TM, in_pad] f32 (VPU work in f32)
        # Two back-to-back MXU passes on the same resident H tile.
        neighbors = jnp.dot(h, w1_ref[...],
                            preferred_element_type=jnp.float32) + b1_ref[...]
        inter = jnp.dot(x_m * h, w2_ref[...],
                        preferred_element_type=jnp.float32) + b2_ref[...]
        o_ref[...] = (_leaky_relu(neighbors) + _leaky_relu(inter)).astype(o_ref.dtype)


@jax.jit
def aggregator_forward(adj, x, w1, b1, w2, b2):
    """adj: [N, N] (A[i, j] = 1 for edge j -> i), x: [N, in_dim],
    w1/w2: [in_dim, out_dim] (pre-transposed nn.Linear weights),
    b1/b2: [1, out_dim].  Returns [N, out_dim] float32."""
    n, in_dim = x.shape
    out_dim = w1.shape[1]

    n_pad, tm, tk = _choose_tiles(n)
    in_pad = _round_up(in_dim, 128)
    out_pad = _round_up(out_dim, 128)

    # Zero-pad to lane-dense, tile-divisible shapes; A/X fed to MXU as bf16.
    a_p = jnp.pad(adj.astype(jnp.bfloat16), ((0, n_pad - n), (0, n_pad - n)))
    x_p = jnp.pad(x.astype(jnp.bfloat16), ((0, n_pad - n), (0, in_pad - in_dim)))
    w1_p = jnp.pad(w1.astype(jnp.float32),
                   ((0, in_pad - in_dim), (0, out_pad - out_dim)))
    w2_p = jnp.pad(w2.astype(jnp.float32),
                   ((0, in_pad - in_dim), (0, out_pad - out_dim)))
    b1_p = jnp.pad(b1.astype(jnp.float32), ((0, 0), (0, out_pad - out_dim)))
    b2_p = jnp.pad(b2.astype(jnp.float32), ((0, 0), (0, out_pad - out_dim)))

    grid = (n_pad // tm, n_pad // tk)

    out_p = pl.pallas_call(
        aggregator_kernel,
        out_shape=jax.ShapeDtypeStruct((n_pad, out_pad), jnp.float32),
        grid=grid,
        in_specs=[
            pl.BlockSpec((tm, tk), lambda i, k: (i, k)),            # A tile
            pl.BlockSpec((tk, in_pad), lambda i, k: (k, 0)),        # X (reduction view)
            pl.BlockSpec((tm, in_pad), lambda i, k: (i, 0)),        # X (row view, for X*H)
            pl.BlockSpec((in_pad, out_pad), lambda i, k: (0, 0)),   # W1 (resident)
            pl.BlockSpec((1, out_pad), lambda i, k: (0, 0)),        # b1 (resident)
            pl.BlockSpec((in_pad, out_pad), lambda i, k: (0, 0)),   # W2 (resident)
            pl.BlockSpec((1, out_pad), lambda i, k: (0, 0)),        # b2 (resident)
        ],
        out_specs=pl.BlockSpec((tm, out_pad), lambda i, k: (i, 0)),
        scratch_shapes=[pltpu.VMEM((tm, in_pad), jnp.float32)],     # H accumulator
        compiler_params=pltpu.CompilerParams(
            dimension_semantics=("parallel", "arbitrary"),
            vmem_limit_bytes=48 * 1024 * 1024),
    )(a_p, x_p, x_p, w1_p, b1_p, w2_p, b2_p)

    return out_p[:n, :out_dim]


def reference_forward(adj, x, w1, b1, w2, b2):
    """Pure-JAX reference of Aggregator.forward (eval mode), f32."""
    adj = adj.astype(jnp.float32)
    x = x.astype(jnp.float32)
    H = adj @ x
    neighbors = _leaky_relu(H @ w1 + b1)
    interactions = _leaky_relu((x * H) @ w2 + b2)
    return neighbors + interactions


if __name__ == "__main__":
    key = jax.random.PRNGKey(0)

    def run_case(case_key, n, in_dim, out_dim, density=0.25):
        k_adj, k_x, k_w1, k_b1, k_w2, k_b2 = jax.random.split(case_key, 6)

        # Random sparse-ish binary adjacency, no self loops, dense representation.
        adj = (jax.random.uniform(k_adj, (n, n)) < density).astype(jnp.float32)
        adj = adj * (1.0 - jnp.eye(n, dtype=jnp.float32))

        # Pre-round node features to bf16-representable values so the kernel's
        # bf16 MXU feed of X is lossless w.r.t. the f32 reference.
        x = jax.random.normal(k_x, (n, in_dim), jnp.float32)
        x = x.astype(jnp.bfloat16).astype(jnp.float32)

        # nn.Linear-style init (uniform +/- 1/sqrt(fan_in)); weights pre-transposed.
        bound = 1.0 / float(in_dim) ** 0.5
        w1 = jax.random.uniform(k_w1, (in_dim, out_dim), minval=-bound, maxval=bound)
        b1 = jax.random.uniform(k_b1, (1, out_dim), minval=-bound, maxval=bound)
        w2 = jax.random.uniform(k_w2, (in_dim, out_dim), minval=-bound, maxval=bound)
        b2 = jax.random.uniform(k_b2, (1, out_dim), minval=-bound, maxval=bound)

        out = jax.block_until_ready(aggregator_forward(adj, x, w1, b1, w2, b2))
        ref = reference_forward(adj, x, w1, b1, w2, b2)
        assert out.shape == (n, out_dim)

        # Tolerances account for TPU default-precision matmul behaviour
        # (possible bf16-truncated operands with f32 accumulation) and for f32
        # accumulation-order differences between the K-tiled kernel and XLA's
        # un-tiled reference dot.  Structural bugs would be orders of
        # magnitude larger.
        max_abs = float(jnp.max(jnp.abs(out - ref)))
        assert jnp.allclose(out, ref, atol=5e-2, rtol=5e-2), max_abs
        rel = float(jnp.linalg.norm(out - ref) / jnp.linalg.norm(ref))
        assert rel < 1e-2, rel

    k1, k2 = jax.random.split(key)
    run_case(k1, n=16, in_dim=32, out_dim=32)     # small, single-tile path
    run_case(k2, n=600, in_dim=40, out_dim=24)    # multi-tile grid + padding path

    print("KERNEL_OK")
</pallas_src>

<mosaic_0001>
module attributes {stable_mosaic.version = 11 : i64} {
  func.func @aggregator_kernel(%arg0: i32, %arg1: i32, %arg2: memref<128x128xbf16, #tpu.memory_space<vmem>>, %arg3: memref<128x128xbf16, #tpu.memory_space<vmem>>, %arg4: memref<128x128xbf16, #tpu.memory_space<vmem>>, %arg5: memref<128x128xf32, #tpu.memory_space<vmem>>, %arg6: memref<1x128xf32, #tpu.memory_space<vmem>>, %arg7: memref<128x128xf32, #tpu.memory_space<vmem>>, %arg8: memref<1x128xf32, #tpu.memory_space<vmem>>, %arg9: memref<128x128xf32, #tpu.memory_space<vmem>>, %arg10: memref<128x128xf32, #tpu.memory_space<vmem>>) attributes {dimension_semantics = [#tpu.dimension_semantics<parallel>, #tpu.dimension_semantics<arbitrary>], iteration_bounds = array<i64: 1, 1>, scalar_prefetch = 0 : i64, scratch_operands = 1 : i64, tpu.core_type = #tpu.core_type<tc>, window_params = [{transform_indices = @transform_0, window_bounds = array<i64: 128, 128>}, {transform_indices = @transform_1, window_bounds = array<i64: 128, 128>}, {transform_indices = @transform_2, window_bounds = array<i64: 128, 128>}, {pipeline_mode = #tpu.pipeline_mode<synchronous>, transform_indices = @transform_3, window_bounds = array<i64: 128, 128>}, {pipeline_mode = #tpu.pipeline_mode<synchronous>, transform_indices = @transform_4, window_bounds = array<i64: 1, 128>}, {pipeline_mode = #tpu.pipeline_mode<synchronous>, transform_indices = @transform_5, window_bounds = array<i64: 128, 128>}, {pipeline_mode = #tpu.pipeline_mode<synchronous>, transform_indices = @transform_6, window_bounds = array<i64: 1, 128>}, {transform_indices = @transform_7, window_bounds = array<i64: 128, 128>}]} {
    %c0_i32 = arith.constant 0 : i32
    %0 = arith.cmpi eq, %arg1, %c0_i32 : i32
    %1 = arith.extui %0 : i1 to i32
    %c0_i32_0 = arith.constant 0 : i32
    %2 = arith.cmpi ne, %1, %c0_i32_0 : i32
    scf.if %2 {
      %cst_10 = arith.constant 0.000000e+00 : f32
      %12 = vector.broadcast %cst_10 : f32 to vector<128x128xf32>
      %c0_11 = arith.constant 0 : index
      %c0_12 = arith.constant 0 : index
      %13 = vector.load %arg10[%c0_11, %c0_12] : memref<128x128xf32, #tpu.memory_space<vmem>>, vector<128x128xf32>
      tpu.vector_store %arg10[%c0_11, %c0_12], %12 {strides = array<i32>} : memref<128x128xf32, #tpu.memory_space<vmem>>, vector<128x128xf32>,
    } else {
    }
    %c0 = arith.constant 0 : index
    %c0_1 = arith.constant 0 : index
    %3 = vector.load %arg10[%c0, %c0_1] : memref<128x128xf32, #tpu.memory_space<vmem>>, vector<128x128xf32>
    %c0_2 = arith.constant 0 : index
    %c0_3 = arith.constant 0 : index
    %4 = vector.load %arg2[%c0_2, %c0_3] : memref<128x128xbf16, #tpu.memory_space<vmem>>, vector<128x128xbf16>
    %c0_4 = arith.constant 0 : index
    %c0_5 = arith.constant 0 : index
    %5 = vector.load %arg3[%c0_4, %c0_5] : memref<128x128xbf16, #tpu.memory_space<vmem>>, vector<128x128xbf16>
    %cst = arith.constant dense<0.000000e+00> : vector<128x128xf32>
    %6 = tpu.matmul %4, %5, %cst {dimension_numbers = #tpu.dot_dimension_numbers<[1], [0], [0], [1], [0, 0, 1, 1], [], []>} : vector<128x128xbf16>, vector<128x128xbf16>, vector<128x128xf32> -> vector<128x128xf32>
    %7 = arith.addf %3, %6 : vector<128x128xf32>
    %c0_6 = arith.constant 0 : index
    %c0_7 = arith.constant 0 : index
    %8 = vector.load %arg10[%c0_6, %c0_7] : memref<128x128xf32, #tpu.memory_space<vmem>>, vector<128x128xf32>
    tpu.vector_store %arg10[%c0_6, %c0_7], %7 {strides = array<i32>} : memref<128x128xf32, #tpu.memory_space<vmem>>, vector<128x128xf32>,
    %c0_i32_8 = arith.constant 0 : i32
    %9 = arith.cmpi eq, %arg1, %c0_i32_8 : i32
    %10 = arith.extui %9 : i1 to i32
    %c0_i32_9 = arith.constant 0 : i32
    %11 = arith.cmpi ne, %10, %c0_i32_9 : i32
    scf.if %11 {
      %c0_10 = arith.constant 0 : index
      %c0_11 = arith.constant 0 : index
      %12 = vector.load %arg10[%c0_10, %c0_11] : memref<128x128xf32, #tpu.memory_space<vmem>>, vector<128x128xf32>
      %c0_12 = arith.constant 0 : index
      %c0_13 = arith.constant 0 : index
      %13 = vector.load %arg4[%c0_12, %c0_13] : memref<128x128xbf16, #tpu.memory_space<vmem>>, vector<128x128xbf16>
      %14 = arith.extf %13 : vector<128x128xbf16> to vector<128x128xf32>
      %c0_14 = arith.constant 0 : index
      %c0_15 = arith.constant 0 : index
      %15 = vector.load %arg5[%c0_14, %c0_15] : memref<128x128xf32, #tpu.memory_space<vmem>>, vector<128x128xf32>
      %cst_16 = arith.constant dense<0.000000e+00> : vector<128x128xf32>
      %16 = tpu.matmul %12, %15, %cst_16 {dimension_numbers = #tpu.dot_dimension_numbers<[1], [0], [0], [1], [0, 0, 1, 1], [], []>} : vector<128x128xf32>, vector<128x128xf32>, vector<128x128xf32> -> vector<128x128xf32>
      %c0_17 = arith.constant 0 : index
      %c0_18 = arith.constant 0 : index
      %17 = vector.load %arg6[%c0_17, %c0_18] : memref<1x128xf32, #tpu.memory_space<vmem>>, vector<1x128xf32>
      %18 = vector.broadcast %17 : vector<1x128xf32> to vector<128x128xf32>
      %19 = arith.addf %16, %18 : vector<128x128xf32>
      %20 = arith.mulf %14, %12 : vector<128x128xf32>
      %c0_19 = arith.constant 0 : index
      %c0_20 = arith.constant 0 : index
      %21 = vector.load %arg7[%c0_19, %c0_20] : memref<128x128xf32, #tpu.memory_space<vmem>>, vector<128x128xf32>
      %cst_21 = arith.constant dense<0.000000e+00> : vector<128x128xf32>
      %22 = tpu.matmul %20, %21, %cst_21 {dimension_numbers = #tpu.dot_dimension_numbers<[1], [0], [0], [1], [0, 0, 1, 1], [], []>} : vector<128x128xf32>, vector<128x128xf32>, vector<128x128xf32> -> vector<128x128xf32>
      %c0_22 = arith.constant 0 : index
      %c0_23 = arith.constant 0 : index
      %23 = vector.load %arg8[%c0_22, %c0_23] : memref<1x128xf32, #tpu.memory_space<vmem>>, vector<1x128xf32>
      %24 = vector.broadcast %23 : vector<1x128xf32> to vector<128x128xf32>
      %25 = arith.addf %22, %24 : vector<128x128xf32>
      %cst_24 = arith.constant 0.000000e+00 : f32
      %26 = vector.broadcast %cst_24 : f32 to vector<128x128xf32>
      %27 = arith.cmpf ogt, %19, %26 : vector<128x128xf32>
      %cst_25 = arith.constant 0.00999999977 : f32
      %28 = vector.broadcast %cst_25 : f32 to vector<128x128xf32>
      %29 = arith.mulf %28, %19 : vector<128x128xf32>
      %30 = arith.select %27, %19, %29 : vector<128x128xi1>, vector<128x128xf32>
      %cst_26 = arith.constant 0.000000e+00 : f32
      %31 = vector.broadcast %cst_26 : f32 to vector<128x128xf32>
      %32 = arith.cmpf ogt, %25, %31 : vector<128x128xf32>
      %cst_27 = arith.constant 0.00999999977 : f32
      %33 = vector.broadcast %cst_27 : f32 to vector<128x128xf32>
      %34 = arith.mulf %33, %25 : vector<128x128xf32>
      %35 = arith.select %32, %25, %34 : vector<128x128xi1>, vector<128x128xf32>
      %36 = arith.addf %30, %35 : vector<128x128xf32>
      %c0_28 = arith.constant 0 : index
      %c0_29 = arith.constant 0 : index
      %37 = vector.load %arg9[%c0_28, %c0_29] : memref<128x128xf32, #tpu.memory_space<vmem>>, vector<128x128xf32>
      tpu.vector_store %arg9[%c0_28, %c0_29], %36 {strides = array<i32>} : memref<128x128xf32, #tpu.memory_space<vmem>>, vector<128x128xf32>,
    } else {
    }
    return
  }
  func.func @transform_0(%arg0: i32, %arg1: i32) -> (i32, i32) {
    %c0_i32 = arith.constant 0 : i32
    return %arg0, %arg1 : i32, i32
  }
  func.func @transform_1(%arg0: i32, %arg1: i32) -> (i32, i32) {
    %c0_i32 = arith.constant 0 : i32
    %c0_i32_0 = arith.constant 0 : i32
    return %arg1, %c0_i32 : i32, i32
  }
  func.func @transform_2(%arg0: i32, %arg1: i32) -> (i32, i32) {
    %c0_i32 = arith.constant 0 : i32
    %c0_i32_0 = arith.constant 0 : i32
    return %arg0, %c0_i32 : i32, i32
  }
  func.func @transform_3(%arg0: i32, %arg1: i32) -> (i32, i32) {
    %c0_i32 = arith.constant 0 : i32
    %c0_i32_0 = arith.constant 0 : i32
    %c0_i32_1 = arith.constant 0 : i32
    return %c0_i32, %c0_i32_0 : i32, i32
  }
  func.func @transform_4(%arg0: i32, %arg1: i32) -> (i32, i32) {
    %c0_i32 = arith.constant 0 : i32
    %c0_i32_0 = arith.constant 0 : i32
    %c0_i32_1 = arith.constant 0 : i32
    return %c0_i32, %c0_i32_0 : i32, i32
  }
  func.func @transform_5(%arg0: i32, %arg1: i32) -> (i32, i32) {
    %c0_i32 = arith.constant 0 : i32
    %c0_i32_0 = arith.constant 0 : i32
    %c0_i32_1 = arith.constant 0 : i32
    return %c0_i32, %c0_i32_0 : i32, i32
  }
  func.func @transform_6(%arg0: i32, %arg1: i32) -> (i32, i32) {
    %c0_i32 = arith.constant 0 : i32
    %c0_i32_0 = arith.constant 0 : i32
    %c0_i32_1 = arith.constant 0 : i32
    return %c0_i32, %c0_i32_0 : i32, i32
  }
  func.func @transform_7(%arg0: i32, %arg1: i32) -> (i32, i32) {
    %c0_i32 = arith.constant 0 : i32
    %c0_i32_0 = arith.constant 0 : i32
    return %arg0, %c0_i32 : i32, i32
  }
}

</mosaic_0001>

<llo_original>
// kernel: aggregator_forward.1
$region0: #{aggregator_forward.1}
  #allocation0 [shape = 'u32[]', space=smem, size = 0x4, offset = 0x4, fixed_abs, tag = 'smem constant byte address 0x4 - core index']
  #allocation1 [shape = 'u32[72,128]{1,0:T(1,128)}', space=vmem, size = 0x9000, scoped, tag = 'internal scratch']
  #allocation2 [shape = 'f32[128,128]{1,0:T(8,128)}', space=vmem, size = 0x10000, scoped, tag = 'scratch operand']
  %s0 = inlined_call_operand.vmem [shape: bf16[128,128], index: 0, kind: input, shape index: {}]
  %s1 = inlined_call_operand.vmem [shape: bf16[128,128], index: 1, kind: input, shape index: {}, may-alias: {1,2}]
  %s2 = inlined_call_operand.vmem [shape: bf16[128,128], index: 2, kind: input, shape index: {}, may-alias: {1,2}]
  %s3 = inlined_call_operand.vmem [shape: f32[128,128], index: 3, kind: input, shape index: {}]
  %s4 = inlined_call_operand.vmem [shape: f32[1,128], index: 4, kind: input, shape index: {}]
  %s5 = inlined_call_operand.vmem [shape: f32[128,128], index: 5, kind: input, shape index: {}]
  %s6 = inlined_call_operand.vmem [shape: f32[1,128], index: 6, kind: input, shape index: {}]
  %s7 = inlined_call_operand.vmem [shape: f32[128,128], index: 7, kind: output, shape index: {}]
  %s8 = sld [smem:[#allocation0]]
  $region46: #{aggregator_forward.1} parent=0
    _
  %s10 = ssub.s32 1, %s8
  %s11 = scalar_select 0, %s10, %s8
  // Predicated region
  $region2: #{aggregator_forward.1} parent=0 // pred_check
    _
  $region3: #{aggregator_forward.1} parent=0 // pred_check_branch
    %13 = sbr.rel (0) target = $region5
  $region4: #{aggregator_forward.1} parent=0 // pred_region
    _
  $region5: #{aggregator_forward.1} parent=0 // pred_fallthru
    _
  // Predicated region
  $region6: #{aggregator_forward.1} parent=0 // pred_check
    _
  $region7: #{aggregator_forward.1} parent=0 // pred_check_branch
    %15 = sbr.rel (0) target = $region9
  $region8: #{aggregator_forward.1} parent=0 // pred_region
    _
  $region9: #{aggregator_forward.1} parent=0 // pred_fallthru
    _
  // Predicated region
  $region10: #{aggregator_forward.1} parent=0 // pred_check
    _
  $region11: #{aggregator_forward.1} parent=0 // pred_check_branch
    %17 = sbr.rel (0) target = $region13
  $region12: #{aggregator_forward.1} parent=0 // pred_region
    _
  $region13: #{aggregator_forward.1} parent=0 // pred_fallthru
    _
  // Predicated region
  $region14: #{aggregator_forward.1} parent=0 // pred_check
    _
  $region15: #{aggregator_forward.1} parent=0 // pred_check_branch
    %19 = sbr.rel (0) target = $region17
  $region16: #{aggregator_forward.1} parent=0 // pred_region
    _
  $region17: #{aggregator_forward.1} parent=0 // pred_fallthru
    _
  // Predicated region
  $region18: #{aggregator_forward.1} parent=0 // pred_check
    _
  $region19: #{aggregator_forward.1} parent=0 // pred_check_branch
    %21 = sbr.rel (0) target = $region21
  $region20: #{aggregator_forward.1} parent=0 // pred_region
    _
  $region21: #{aggregator_forward.1} parent=0 // pred_fallthru
    _
  // Predicated region
  $region22: #{aggregator_forward.1} parent=0 // pred_check
    _
  $region23: #{aggregator_forward.1} parent=0 // pred_check_branch
    %23 = sbr.rel (0) target = $region25
  $region24: #{aggregator_forward.1} parent=0 // pred_region
    _
  $region25: #{aggregator_forward.1} parent=0 // pred_fallthru
    _
  // Predicated region
  $region26: #{aggregator_forward.1} parent=0 // pred_check
    _
  $region27: #{aggregator_forward.1} parent=0 // pred_check_branch
    %25 = sbr.rel (0) target = $region29
  $region28: #{aggregator_forward.1} parent=0 // pred_region
    _
  $region29: #{aggregator_forward.1} parent=0 // pred_fallthru
    _
  %p26 = scmp.eq.s32.totalorder 0, 0
  // Predicated region
  $region30: #{aggregator_forward.1} parent=0 // pred_check
    %p27 = pneg %p26
  $region31: #{aggregator_forward.1} parent=0 // pred_check_branch
    %29 = sbr.rel (%p27) target = $region33
  $region32: #{aggregator_forward.1} parent=0 // pred_region
    %30 = vst [vmem:[#allocation2] sm:$0xff] 0.0
    %31 = vst [vmem:[#allocation2 + $0x8] sm:$0xff] 0.0
    %32 = vst [vmem:[#allocation2 + $0x10] sm:$0xff] 0.0
    %33 = vst [vmem:[#allocation2 + $0x18] sm:$0xff] 0.0
    %34 = vst [vmem:[#allocation2 + $0x20] sm:$0xff] 0.0
    %35 = vst [vmem:[#allocation2 + $0x28] sm:$0xff] 0.0
    %36 = vst [vmem:[#allocation2 + $0x30] sm:$0xff] 0.0
    %37 = vst [vmem:[#allocation2 + $0x38] sm:$0xff] 0.0
    %38 = vst [vmem:[#allocation2 + $0x40] sm:$0xff] 0.0
    %39 = vst [vmem:[#allocation2 + $0x48] sm:$0xff] 0.0
    %40 = vst [vmem:[#allocation2 + $0x50] sm:$0xff] 0.0
    %41 = vst [vmem:[#allocation2 + $0x58] sm:$0xff] 0.0
    %42 = vst [vmem:[#allocation2 + $0x60] sm:$0xff] 0.0
    %43 = vst [vmem:[#allocation2 + $0x68] sm:$0xff] 0.0
    %44 = vst [vmem:[#allocation2 + $0x70] sm:$0xff] 0.0
    %45 = vst [vmem:[#allocation2 + $0x78] sm:$0xff] 0.0
  $region33: #{aggregator_forward.1} parent=0 // pred_fallthru
    _
  %v46 = vld [vmem:[#allocation2] sm:$0xff]
  %v47 = vld [vmem:[#allocation2 + $0x8] sm:$0xff]
  %v48 = vld [vmem:[#allocation2 + $0x10] sm:$0xff]
  %v49 = vld [vmem:[#allocation2 + $0x18] sm:$0xff]
  %v50 = vld [vmem:[#allocation2 + $0x20] sm:$0xff]
  %v51 = vld [vmem:[#allocation2 + $0x28] sm:$0xff]
  %v52 = vld [vmem:[#allocation2 + $0x30] sm:$0xff]
  %v53 = vld [vmem:[#allocation2 + $0x38] sm:$0xff]
  %v54 = vld [vmem:[#allocation2 + $0x40] sm:$0xff]
  %v55 = vld [vmem:[#allocation2 + $0x48] sm:$0xff]
  %v56 = vld [vmem:[#allocation2 + $0x50] sm:$0xff]
  %v57 = vld [vmem:[#allocation2 + $0x58] sm:$0xff]
  %v58 = vld [vmem:[#allocation2 + $0x60] sm:$0xff]
  %v59 = vld [vmem:[#allocation2 + $0x68] sm:$0xff]
  %v60 = vld [vmem:[#allocation2 + $0x70] sm:$0xff]
  %v61 = vld [vmem:[#allocation2 + $0x78] sm:$0xff]
  %v62 = vld [vmem:[%s0] sm:$0xf]
  %v63 = vld [vmem:[%s0 + $0x4] sm:$0xf]
  %v64 = vld [vmem:[%s0 + $0x8] sm:$0xf]
  %v65 = vld [vmem:[%s0 + $0xc] sm:$0xf]
  %v66 = vld [vmem:[%s0 + $0x10] sm:$0xf]
  %v67 = vld [vmem:[%s0 + $0x14] sm:$0xf]
  %v68 = vld [vmem:[%s0 + $0x18] sm:$0xf]
  %v69 = vld [vmem:[%s0 + $0x1c] sm:$0xf]
  %v70 = vld [vmem:[%s0 + $0x20] sm:$0xf]
  %v71 = vld [vmem:[%s0 + $0x24] sm:$0xf]
  %v72 = vld [vmem:[%s0 + $0x28] sm:$0xf]
  %v73 = vld [vmem:[%s0 + $0x2c] sm:$0xf]
  %v74 = vld [vmem:[%s0 + $0x30] sm:$0xf]
  %v75 = vld [vmem:[%s0 + $0x34] sm:$0xf]
  %v76 = vld [vmem:[%s0 + $0x38] sm:$0xf]
  %v77 = vld [vmem:[%s0 + $0x3c] sm:$0xf]
  %v78 = vld [vmem:[%s1] sm:$0xf]
  %v79 = vld [vmem:[%s1 + $0x4] sm:$0xf]
  %v80 = vld [vmem:[%s1 + $0x8] sm:$0xf]
  %v81 = vld [vmem:[%s1 + $0xc] sm:$0xf]
  %v82 = vld [vmem:[%s1 + $0x10] sm:$0xf]
  %v83 = vld [vmem:[%s1 + $0x14] sm:$0xf]
  %v84 = vld [vmem:[%s1 + $0x18] sm:$0xf]
  %v85 = vld [vmem:[%s1 + $0x1c] sm:$0xf]
  %v86 = vld [vmem:[%s1 + $0x20] sm:$0xf]
  %v87 = vld [vmem:[%s1 + $0x24] sm:$0xf]
  %v88 = vld [vmem:[%s1 + $0x28] sm:$0xf]
  %v89 = vld [vmem:[%s1 + $0x2c] sm:$0xf]
  %v90 = vld [vmem:[%s1 + $0x30] sm:$0xf]
  %v91 = vld [vmem:[%s1 + $0x34] sm:$0xf]
  %v92 = vld [vmem:[%s1 + $0x38] sm:$0xf]
  %v93 = vld [vmem:[%s1 + $0x3c] sm:$0xf]
  %v110 = vunpack.c.l.b16 %v62
  %v111 = vunpack.c.l.b16 %v63
  %v112 = vunpack.c.l.b16 %v64
  %v113 = vunpack.c.l.b16 %v65
  %v114 = vunpack.c.l.b16 %v66
  %v115 = vunpack.c.l.b16 %v67
  %v116 = vunpack.c.l.b16 %v68
  %v117 = vunpack.c.l.b16 %v69
  %v118 = vunpack.c.l.b16 %v70
  %v119 = vunpack.c.l.b16 %v71
  %v120 = vunpack.c.l.b16 %v72
  %v121 = vunpack.c.l.b16 %v73
  %v122 = vunpack.c.l.b16 %v74
  %v123 = vunpack.c.l.b16 %v75
  %v124 = vunpack.c.l.b16 %v76
  %v125 = vunpack.c.l.b16 %v77
  %v126 = vpack.c.b16 %v111, %v110
  %v127 = vpack.c.b16 %v113, %v112
  %v128 = vpack.c.b16 %v115, %v114
  %v129 = vpack.c.b16 %v117, %v116
  %v130 = vpack.c.b16 %v119, %v118
  %v131 = vpack.c.b16 %v121, %v120
  %v132 = vpack.c.b16 %v123, %v122
  %v133 = vpack.c.b16 %v125, %v124
  %v158 = vunpack.c.l.b16 %v78
  %v159 = vunpack.c.l.b16 %v79
  %v160 = vunpack.c.l.b16 %v80
  %v161 = vunpack.c.l.b16 %v81
  %v162 = vunpack.c.l.b16 %v82
  %v163 = vunpack.c.l.b16 %v83
  %v164 = vunpack.c.l.b16 %v84
  %v165 = vunpack.c.l.b16 %v85
  %v166 = vunpack.c.l.b16 %v86
  %v167 = vunpack.c.l.b16 %v87
  %v168 = vunpack.c.l.b16 %v88
  %v169 = vunpack.c.l.b16 %v89
  %v170 = vunpack.c.l.b16 %v90
  %v171 = vunpack.c.l.b16 %v91
  %v172 = vunpack.c.l.b16 %v92
  %v173 = vunpack.c.l.b16 %v93
  %v174 = vpack.c.b16 %v159, %v158
  %v175 = vpack.c.b16 %v161, %v160
  %v176 = vpack.c.b16 %v163, %v162
  %v177 = vpack.c.b16 %v165, %v164
  %v178 = vpack.c.b16 %v167, %v166
  %v179 = vpack.c.b16 %v169, %v168
  %v180 = vpack.c.b16 %v171, %v170
  %v181 = vpack.c.b16 %v173, %v172
  %190 = vmatpush.bf16.msra.mxu0 %v181
  %191 = vmatpush.bf16.msra.mxu0 %v180
  %192 = vmatpush.bf16.msra.mxu0 %v179
  %193 = vmatpush.bf16.msra.mxu0 %v178
  %194 = vmatpush.bf16.msra.mxu0 %v177
  %195 = vmatpush.bf16.msra.mxu0 %v176
  %196 = vmatpush.bf16.msra.mxu0 %v175
  %197 = vmatpush.bf16.msra.mxu0 %v174
  %198 = vmatmul.bf16.gmra.mxu0 %v126
  %v199 = vpop.f32.mrf.mxu0
  %v200 = vadd.f32 0.0, %v199
  %v201 = vpop.f32.mrf.mxu0
  %v202 = vadd.f32 0.0, %v201
  %203 = vmatmul.bf16.gmra.mxu0 %v127
  %v204 = vpop.f32.mrf.mxu0
  %v205 = vadd.f32 0.0, %v204
  %v206 = vpop.f32.mrf.mxu0
  %v207 = vadd.f32 0.0, %v206
  %208 = vmatmul.bf16.gmra.mxu0 %v128
  %v209 = vpop.f32.mrf.mxu0
  %v210 = vadd.f32 0.0, %v209
  %v211 = vpop.f32.mrf.mxu0
  %v212 = vadd.f32 0.0, %v211
  %213 = vmatmul.bf16.gmra.mxu0 %v129
  %v214 = vpop.f32.mrf.mxu0
  %v215 = vadd.f32 0.0, %v214
  %v216 = vpop.f32.mrf.mxu0
  %v217 = vadd.f32 0.0, %v216
  %218 = vmatmul.bf16.gmra.mxu0 %v130
  %v219 = vpop.f32.mrf.mxu0
  %v220 = vadd.f32 0.0, %v219
  %v221 = vpop.f32.mrf.mxu0
  %v222 = vadd.f32 0.0, %v221
  %223 = vmatmul.bf16.gmra.mxu0 %v131
  %v224 = vpop.f32.mrf.mxu0
  %v225 = vadd.f32 0.0, %v224
  %v226 = vpop.f32.mrf.mxu0
  %v227 = vadd.f32 0.0, %v226
  %228 = vmatmul.bf16.gmra.mxu0 %v132
  %v229 = vpop.f32.mrf.mxu0
  %v230 = vadd.f32 0.0, %v229
  %v231 = vpop.f32.mrf.mxu0
  %v232 = vadd.f32 0.0, %v231
  %233 = vmatmul.bf16.gmra.mxu0 %v133
  %v234 = vpop.f32.mrf.mxu0
  %v235 = vadd.f32 0.0, %v234
  %v236 = vpop.f32.mrf.mxu0
  %v237 = vadd.f32 0.0, %v236
  %238 = vdwg.mxu0
  %v239 = vadd.f32 %v46, %v200
  %v240 = vadd.f32 %v47, %v202
  %v241 = vadd.f32 %v48, %v205
  %v242 = vadd.f32 %v49, %v207
  %v243 = vadd.f32 %v50, %v210
  %v244 = vadd.f32 %v51, %v212
  %v245 = vadd.f32 %v52, %v215
  %v246 = vadd.f32 %v53, %v217
  %v247 = vadd.f32 %v54, %v220
  %v248 = vadd.f32 %v55, %v222
  %v249 = vadd.f32 %v56, %v225
  %v250 = vadd.f32 %v57, %v227
  %v251 = vadd.f32 %v58, %v230
  %v252 = vadd.f32 %v59, %v232
  %v253 = vadd.f32 %v60, %v235
  %v254 = vadd.f32 %v61, %v237
  %255 = vst [vmem:[#allocation2] sm:$0xff] %v239
  %256 = vst [vmem:[#allocation2 + $0x8] sm:$0xff] %v240
  %257 = vst [vmem:[#allocation2 + $0x10] sm:$0xff] %v241
  %258 = vst [vmem:[#allocation2 + $0x18] sm:$0xff] %v242
  %259 = vst [vmem:[#allocation2 + $0x20] sm:$0xff] %v243
  %260 = vst [vmem:[#allocation2 + $0x28] sm:$0xff] %v244
  %261 = vst [vmem:[#allocation2 + $0x30] sm:$0xff] %v245
  %262 = vst [vmem:[#allocation2 + $0x38] sm:$0xff] %v246
  %263 = vst [vmem:[#allocation2 + $0x40] sm:$0xff] %v247
  %264 = vst [vmem:[#allocation2 + $0x48] sm:$0xff] %v248
  %265 = vst [vmem:[#allocation2 + $0x50] sm:$0xff] %v249
  %266 = vst [vmem:[#allocation2 + $0x58] sm:$0xff] %v250
  %267 = vst [vmem:[#allocation2 + $0x60] sm:$0xff] %v251
  %268 = vst [vmem:[#allocation2 + $0x68] sm:$0xff] %v252
  %269 = vst [vmem:[#allocation2 + $0x70] sm:$0xff] %v253
  %270 = vst [vmem:[#allocation2 + $0x78] sm:$0xff] %v254
  // Predicated region
  $region34: #{aggregator_forward.1} parent=0 // pred_check
    %p271 = pneg %p26
  $region35: #{aggregator_forward.1} parent=0 // pred_check_branch
    %273 = sbr.rel (%p271) target = $region37
  $region36: #{aggregator_forward.1} parent=0 // pred_region
    %v274 = vld [vmem:[#allocation2] sm:$0xff]
    %v275 = vld [vmem:[#allocation2 + $0x8] sm:$0xff]
    %v276 = vld [vmem:[#allocation2 + $0x10] sm:$0xff]
    %v277 = vld [vmem:[#allocation2 + $0x18] sm:$0xff]
    %v278 = vld [vmem:[#allocation2 + $0x20] sm:$0xff]
    %v279 = vld [vmem:[#allocation2 + $0x28] sm:$0xff]
    %v280 = vld [vmem:[#allocation2 + $0x30] sm:$0xff]
    %v281 = vld [vmem:[#allocation2 + $0x38] sm:$0xff]
    %v282 = vld [vmem:[#allocation2 + $0x40] sm:$0xff]
    %v283 = vld [vmem:[#allocation2 + $0x48] sm:$0xff]
    %v284 = vld [vmem:[#allocation2 + $0x50] sm:$0xff]
    %v285 = vld [vmem:[#allocation2 + $0x58] sm:$0xff]
    %v286 = vld [vmem:[#allocation2 + $0x60] sm:$0xff]
    %v287 = vld [vmem:[#allocation2 + $0x68] sm:$0xff]
    %v288 = vld [vmem:[#allocation2 + $0x70] sm:$0xff]
    %v289 = vld [vmem:[#allocation2 + $0x78] sm:$0xff]
    %v290 = vld [vmem:[%s2] sm:$0xf]
    %v291 = vld [vmem:[%s2 + $0x4] sm:$0xf]
    %v292 = vld [vmem:[%s2 + $0x8] sm:$0xf]
    %v293 = vld [vmem:[%s2 + $0xc] sm:$0xf]
    %v294 = vld [vmem:[%s2 + $0x10] sm:$0xf]
    %v295 = vld [vmem:[%s2 + $0x14] sm:$0xf]
    %v296 = vld [vmem:[%s2 + $0x18] sm:$0xf]
    %v297 = vld [vmem:[%s2 + $0x1c] sm:$0xf]
    %v298 = vld [vmem:[%s2 + $0x20] sm:$0xf]
    %v299 = vld [vmem:[%s2 + $0x24] sm:$0xf]
    %v300 = vld [vmem:[%s2 + $0x28] sm:$0xf]
    %v301 = vld [vmem:[%s2 + $0x2c] sm:$0xf]
    %v302 = vld [vmem:[%s2 + $0x30] sm:$0xf]
    %v303 = vld [vmem:[%s2 + $0x34] sm:$0xf]
    %v304 = vld [vmem:[%s2 + $0x38] sm:$0xf]
    %v305 = vld [vmem:[%s2 + $0x3c] sm:$0xf]
    %v306 = vunpack.c.l.bf16 %v290
    %v307 = vunpack.c.l.bf16 %v291
    %v308 = vunpack.c.l.bf16 %v292
    %v309 = vunpack.c.l.bf16 %v293
    %v310 = vunpack.c.l.bf16 %v294
    %v311 = vunpack.c.l.bf16 %v295
    %v312 = vunpack.c.l.bf16 %v296
    %v313 = vunpack.c.l.bf16 %v297
    %v314 = vunpack.c.l.bf16 %v298
    %v315 = vunpack.c.l.bf16 %v299
    %v316 = vunpack.c.l.bf16 %v300
    %v317 = vunpack.c.l.bf16 %v301
    %v318 = vunpack.c.l.bf16 %v302
    %v319 = vunpack.c.l.bf16 %v303
    %v320 = vunpack.c.l.bf16 %v304
    %v321 = vunpack.c.l.bf16 %v305
    %v322 = vld [vmem:[%s3] sm:$0xff]
    %v323 = vld [vmem:[%s3 + $0x8] sm:$0xff]
    %v324 = vld [vmem:[%s3 + $0x10] sm:$0xff]
    %v325 = vld [vmem:[%s3 + $0x18] sm:$0xff]
    %v326 = vld [vmem:[%s3 + $0x20] sm:$0xff]
    %v327 = vld [vmem:[%s3 + $0x28] sm:$0xff]
    %v328 = vld [vmem:[%s3 + $0x30] sm:$0xff]
    %v329 = vld [vmem:[%s3 + $0x38] sm:$0xff]
    %v330 = vld [vmem:[%s3 + $0x40] sm:$0xff]
    %v331 = vld [vmem:[%s3 + $0x48] sm:$0xff]
    %v332 = vld [vmem:[%s3 + $0x50] sm:$0xff]
    %v333 = vld [vmem:[%s3 + $0x58] sm:$0xff]
    %v334 = vld [vmem:[%s3 + $0x60] sm:$0xff]
    %v335 = vld [vmem:[%s3 + $0x68] sm:$0xff]
    %v336 = vld [vmem:[%s3 + $0x70] sm:$0xff]
    %v337 = vld [vmem:[%s3 + $0x78] sm:$0xff]
    %v338 = vld [vmem:[%s4] sm:$0x1]
    %v340 = vperm.slane %v338, 0
    %342 = vmatpush.msra.mxu0 %v337
    %343 = vmatpush.msra.mxu0 %v336
    %344 = vmatpush.msra.mxu0 %v335
    %345 = vmatpush.msra.mxu0 %v334
    %346 = vmatpush.msra.mxu0 %v333
    %347 = vmatpush.msra.mxu0 %v332
    %348 = vmatpush.msra.mxu0 %v331
    %349 = vmatpush.msra.mxu0 %v330
    %350 = vmatpush.msra.mxu0 %v329
    %351 = vmatpush.msra.mxu0 %v328
    %352 = vmatpush.msra.mxu0 %v327
    %353 = vmatpush.msra.mxu0 %v326
    %354 = vmatpush.msra.mxu0 %v325
    %355 = vmatpush.msra.mxu0 %v324
    %356 = vmatpush.msra.mxu0 %v323
    %357 = vmatpush.msra.mxu0 %v322
    %358 = vmatmul.f32.gmra.mxu0 %v274
    %v359 = vpop.f32.mrf.mxu0
    %v360 = vadd.f32 %v340, %v359
    %361 = vmatmul.f32.gmra.mxu0 %v275
    %v362 = vpop.f32.mrf.mxu0
    %v363 = vadd.f32 %v340, %v362
    %364 = vmatmul.f32.gmra.mxu0 %v276
    %v365 = vpop.f32.mrf.mxu0
    %v366 = vadd.f32 %v340, %v365
    %367 = vmatmul.f32.gmra.mxu0 %v277
    %v368 = vpop.f32.mrf.mxu0
    %v369 = vadd.f32 %v340, %v368
    %370 = vmatmul.f32.gmra.mxu0 %v278
    %v371 = vpop.f32.mrf.mxu0
    %v372 = vadd.f32 %v340, %v371
    %373 = vmatmul.f32.gmra.mxu0 %v279
    %v374 = vpop.f32.mrf.mxu0
    %v375 = vadd.f32 %v340, %v374
    %376 = vmatmul.f32.gmra.mxu0 %v280
    %v377 = vpop.f32.mrf.mxu0
    %v378 = vadd.f32 %v340, %v377
    %379 = vmatmul.f32.gmra.mxu0 %v281
    %v380 = vpop.f32.mrf.mxu0
    %v381 = vadd.f32 %v340, %v380
    %382 = vmatmul.f32.gmra.mxu0 %v282
    %v383 = vpop.f32.mrf.mxu0
    %v384 = vadd.f32 %v340, %v383
    %385 = vmatmul.f32.gmra.mxu0 %v283
    %v386 = vpop.f32.mrf.mxu0
    %v387 = vadd.f32 %v340, %v386
    %388 = vmatmul.f32.gmra.mxu0 %v284
    %v389 = vpop.f32.mrf.mxu0
    %v390 = vadd.f32 %v340, %v389
    %391 = vmatmul.f32.gmra.mxu0 %v285
    %v392 = vpop.f32.mrf.mxu0
    %v393 = vadd.f32 %v340, %v392
    %394 = vmatmul.f32.gmra.mxu0 %v286
    %v395 = vpop.f32.mrf.mxu0
    %v396 = vadd.f32 %v340, %v395
    %397 = vmatmul.f32.gmra.mxu0 %v287
    %v398 = vpop.f32.mrf.mxu0
    %v399 = vadd.f32 %v340, %v398
    %400 = vmatmul.f32.gmra.mxu0 %v288
    %v401 = vpop.f32.mrf.mxu0
    %v402 = vadd.f32 %v340, %v401
    %403 = vmatmul.f32.gmra.mxu0 %v289
    %v404 = vpop.f32.mrf.mxu0
    %v405 = vadd.f32 %v340, %v404
    %406 = vdwg.mxu0
    %v407 = vmul.f32 %v306, %v274
    %v408 = vmul.f32 %v307, %v275
    %v409 = vmul.f32 %v308, %v276
    %v410 = vmul.f32 %v309, %v277
    %v411 = vmul.f32 %v310, %v278
    %v412 = vmul.f32 %v311, %v279
    %v413 = vmul.f32 %v312, %v280
    %v414 = vmul.f32 %v313, %v281
    %v415 = vmul.f32 %v314, %v282
    %v416 = vmul.f32 %v315, %v283
    %v417 = vmul.f32 %v316, %v284
    %v418 = vmul.f32 %v317, %v285
    %v419 = vmul.f32 %v318, %v286
    %v420 = vmul.f32 %v319, %v287
    %v421 = vmul.f32 %v320, %v288
    %v422 = vmul.f32 %v321, %v289
    %v423 = vld [vmem:[%s5] sm:$0xff]
    %v424 = vld [vmem:[%s5 + $0x8] sm:$0xff]
    %v425 = vld [vmem:[%s5 + $0x10] sm:$0xff]
    %v426 = vld [vmem:[%s5 + $0x18] sm:$0xff]
    %v427 = vld [vmem:[%s5 + $0x20] sm:$0xff]
    %v428 = vld [vmem:[%s5 + $0x28] sm:$0xff]
    %v429 = vld [vmem:[%s5 + $0x30] sm:$0xff]
    %v430 = vld [vmem:[%s5 + $0x38] sm:$0xff]
    %v431 = vld [vmem:[%s5 + $0x40] sm:$0xff]
    %v432 = vld [vmem:[%s5 + $0x48] sm:$0xff]
    %v433 = vld [vmem:[%s5 + $0x50] sm:$0xff]
    %v434 = vld [vmem:[%s5 + $0x58] sm:$0xff]
    %v435 = vld [vmem:[%s5 + $0x60] sm:$0xff]
    %v436 = vld [vmem:[%s5 + $0x68] sm:$0xff]
    %v437 = vld [vmem:[%s5 + $0x70] sm:$0xff]
    %v438 = vld [vmem:[%s5 + $0x78] sm:$0xff]
    %v439 = vld [vmem:[%s6] sm:$0x1]
    %v441 = vperm.slane %v439, 0
    %443 = vmatpush.msra.mxu0 %v438
    %444 = vmatpush.msra.mxu0 %v437
    %445 = vmatpush.msra.mxu0 %v436
    %446 = vmatpush.msra.mxu0 %v435
    %447 = vmatpush.msra.mxu0 %v434
    %448 = vmatpush.msra.mxu0 %v433
    %449 = vmatpush.msra.mxu0 %v432
    %450 = vmatpush.msra.mxu0 %v431
    %451 = vmatpush.msra.mxu0 %v430
    %452 = vmatpush.msra.mxu0 %v429
    %453 = vmatpush.msra.mxu0 %v428
    %454 = vmatpush.msra.mxu0 %v427
    %455 = vmatpush.msra.mxu0 %v426
    %456 = vmatpush.msra.mxu0 %v425
    %457 = vmatpush.msra.mxu0 %v424
    %458 = vmatpush.msra.mxu0 %v423
    %459 = vmatmul.f32.gmra.mxu0 %v407
    %v460 = vpop.f32.mrf.mxu0
    %v461 = vadd.f32 %v441, %v460
    %462 = vmatmul.f32.gmra.mxu0 %v408
    %v463 = vpop.f32.mrf.mxu0
    %v464 = vadd.f32 %v441, %v463
    %465 = vmatmul.f32.gmra.mxu0 %v409
    %v466 = vpop.f32.mrf.mxu0
    %v467 = vadd.f32 %v441, %v466
    %468 = vmatmul.f32.gmra.mxu0 %v410
    %v469 = vpop.f32.mrf.mxu0
    %v470 = vadd.f32 %v441, %v469
    %471 = vmatmul.f32.gmra.mxu0 %v411
    %v472 = vpop.f32.mrf.mxu0
    %v473 = vadd.f32 %v441, %v472
    %474 = vmatmul.f32.gmra.mxu0 %v412
    %v475 = vpop.f32.mrf.mxu0
    %v476 = vadd.f32 %v441, %v475
    %477 = vmatmul.f32.gmra.mxu0 %v413
    %v478 = vpop.f32.mrf.mxu0
    %v479 = vadd.f32 %v441, %v478
    %480 = vmatmul.f32.gmra.mxu0 %v414
    %v481 = vpop.f32.mrf.mxu0
    %v482 = vadd.f32 %v441, %v481
    %483 = vmatmul.f32.gmra.mxu0 %v415
    %v484 = vpop.f32.mrf.mxu0
    %v485 = vadd.f32 %v441, %v484
    %486 = vmatmul.f32.gmra.mxu0 %v416
    %v487 = vpop.f32.mrf.mxu0
    %v488 = vadd.f32 %v441, %v487
    %489 = vmatmul.f32.gmra.mxu0 %v417
    %v490 = vpop.f32.mrf.mxu0
    %v491 = vadd.f32 %v441, %v490
    %492 = vmatmul.f32.gmra.mxu0 %v418
    %v493 = vpop.f32.mrf.mxu0
    %v494 = vadd.f32 %v441, %v493
    %495 = vmatmul.f32.gmra.mxu0 %v419
    %v496 = vpop.f32.mrf.mxu0
    %v497 = vadd.f32 %v441, %v496
    %498 = vmatmul.f32.gmra.mxu0 %v420
    %v499 = vpop.f32.mrf.mxu0
    %v500 = vadd.f32 %v441, %v499
    %501 = vmatmul.f32.gmra.mxu0 %v421
    %v502 = vpop.f32.mrf.mxu0
    %v503 = vadd.f32 %v441, %v502
    %504 = vmatmul.f32.gmra.mxu0 %v422
    %v505 = vpop.f32.mrf.mxu0
    %v506 = vadd.f32 %v441, %v505
    %507 = vdwg.mxu0
    %vm508 = vcmp.gt.f32.partialorder %v360, 0.0
    %vm509 = vcmp.gt.f32.partialorder %v363, 0.0
    %vm510 = vcmp.gt.f32.partialorder %v366, 0.0
    %vm511 = vcmp.gt.f32.partialorder %v369, 0.0
    %vm512 = vcmp.gt.f32.partialorder %v372, 0.0
    %vm513 = vcmp.gt.f32.partialorder %v375, 0.0
    %vm514 = vcmp.gt.f32.partialorder %v378, 0.0
    %vm515 = vcmp.gt.f32.partialorder %v381, 0.0
    %vm516 = vcmp.gt.f32.partialorder %v384, 0.0
    %vm517 = vcmp.gt.f32.partialorder %v387, 0.0
    %vm518 = vcmp.gt.f32.partialorder %v390, 0.0
    %vm519 = vcmp.gt.f32.partialorder %v393, 0.0
    %vm520 = vcmp.gt.f32.partialorder %v396, 0.0
    %vm521 = vcmp.gt.f32.partialorder %v399, 0.0
    %vm522 = vcmp.gt.f32.partialorder %v402, 0.0
    %vm523 = vcmp.gt.f32.partialorder %v405, 0.0
    %v524 = vmul.f32 %v360, 0.01
    %v525 = vmul.f32 %v363, 0.01
    %v526 = vmul.f32 %v366, 0.01
    %v527 = vmul.f32 %v369, 0.01
    %v528 = vmul.f32 %v372, 0.01
    %v529 = vmul.f32 %v375, 0.01
    %v530 = vmul.f32 %v378, 0.01
    %v531 = vmul.f32 %v381, 0.01
    %v532 = vmul.f32 %v384, 0.01
    %v533 = vmul.f32 %v387, 0.01
    %v534 = vmul.f32 %v390, 0.01
    %v535 = vmul.f32 %v393, 0.01
    %v536 = vmul.f32 %v396, 0.01
    %v537 = vmul.f32 %v399, 0.01
    %v538 = vmul.f32 %v402, 0.01
    %v539 = vmul.f32 %v405, 0.01
    %v540 = vsel %vm508, %v360, %v524
    %v541 = vsel %vm509, %v363, %v525
    %v542 = vsel %vm510, %v366, %v526
    %v543 = vsel %vm511, %v369, %v527
    %v544 = vsel %vm512, %v372, %v528
    %v545 = vsel %vm513, %v375, %v529
    %v546 = vsel %vm514, %v378, %v530
    %v547 = vsel %vm515, %v381, %v531
    %v548 = vsel %vm516, %v384, %v532
    %v549 = vsel %vm517, %v387, %v533
    %v550 = vsel %vm518, %v390, %v534
    %v551 = vsel %vm519, %v393, %v535
    %v552 = vsel %vm520, %v396, %v536
    %v553 = vsel %vm521, %v399, %v537
    %v554 = vsel %vm522, %v402, %v538
    %v555 = vsel %vm523, %v405, %v539
    %vm556 = vcmp.gt.f32.partialorder %v461, 0.0
    %vm557 = vcmp.gt.f32.partialorder %v464, 0.0
    %vm558 = vcmp.gt.f32.partialorder %v467, 0.0
    %vm559 = vcmp.gt.f32.partialorder %v470, 0.0
    %vm560 = vcmp.gt.f32.partialorder %v473, 0.0
    %vm561 = vcmp.gt.f32.partialorder %v476, 0.0
    %vm562 = vcmp.gt.f32.partialorder %v479, 0.0
    %vm563 = vcmp.gt.f32.partialorder %v482, 0.0
    %vm564 = vcmp.gt.f32.partialorder %v485, 0.0
    %vm565 = vcmp.gt.f32.partialorder %v488, 0.0
    %vm566 = vcmp.gt.f32.partialorder %v491, 0.0
    %vm567 = vcmp.gt.f32.partialorder %v494, 0.0
    %vm568 = vcmp.gt.f32.partialorder %v497, 0.0
    %vm569 = vcmp.gt.f32.partialorder %v500, 0.0
    %vm570 = vcmp.gt.f32.partialorder %v503, 0.0
    %vm571 = vcmp.gt.f32.partialorder %v506, 0.0
    %v572 = vmul.f32 %v461, 0.01
    %v573 = vmul.f32 %v464, 0.01
    %v574 = vmul.f32 %v467, 0.01
    %v575 = vmul.f32 %v470, 0.01
    %v576 = vmul.f32 %v473, 0.01
    %v577 = vmul.f32 %v476, 0.01
    %v578 = vmul.f32 %v479, 0.01
    %v579 = vmul.f32 %v482, 0.01
    %v580 = vmul.f32 %v485, 0.01
    %v581 = vmul.f32 %v488, 0.01
    %v582 = vmul.f32 %v491, 0.01
    %v583 = vmul.f32 %v494, 0.01
    %v584 = vmul.f32 %v497, 0.01
    %v585 = vmul.f32 %v500, 0.01
    %v586 = vmul.f32 %v503, 0.01
    %v587 = vmul.f32 %v506, 0.01
    %v588 = vsel %vm556, %v461, %v572
    %v589 = vsel %vm557, %v464, %v573
    %v590 = vsel %vm558, %v467, %v574
    %v591 = vsel %vm559, %v470, %v575
    %v592 = vsel %vm560, %v473, %v576
    %v593 = vsel %vm561, %v476, %v577
    %v594 = vsel %vm562, %v479, %v578
    %v595 = vsel %vm563, %v482, %v579
    %v596 = vsel %vm564, %v485, %v580
    %v597 = vsel %vm565, %v488, %v581
    %v598 = vsel %vm566, %v491, %v582
    %v599 = vsel %vm567, %v494, %v583
    %v600 = vsel %vm568, %v497, %v584
    %v601 = vsel %vm569, %v500, %v585
    %v602 = vsel %vm570, %v503, %v586
    %v603 = vsel %vm571, %v506, %v587
    %v604 = vadd.f32 %v540, %v588
    %v605 = vadd.f32 %v541, %v589
    %v606 = vadd.f32 %v542, %v590
    %v607 = vadd.f32 %v543, %v591
    %v608 = vadd.f32 %v544, %v592
    %v609 = vadd.f32 %v545, %v593
    %v610 = vadd.f32 %v546, %v594
    %v611 = vadd.f32 %v547, %v595
    %v612 = vadd.f32 %v548, %v596
    %v613 = vadd.f32 %v549, %v597
    %v614 = vadd.f32 %v550, %v598
    %v615 = vadd.f32 %v551, %v599
    %v616 = vadd.f32 %v552, %v600
    %v617 = vadd.f32 %v553, %v601
    %v618 = vadd.f32 %v554, %v602
    %v619 = vadd.f32 %v555, %v603
    %620 = vst [vmem:[%s7] sm:$0xff] %v604
    %621 = vst [vmem:[%s7 + $0x8] sm:$0xff] %v605
    %622 = vst [vmem:[%s7 + $0x10] sm:$0xff] %v606
    %623 = vst [vmem:[%s7 + $0x18] sm:$0xff] %v607
    %624 = vst [vmem:[%s7 + $0x20] sm:$0xff] %v608
    %625 = vst [vmem:[%s7 + $0x28] sm:$0xff] %v609
    %626 = vst [vmem:[%s7 + $0x30] sm:$0xff] %v610
    %627 = vst [vmem:[%s7 + $0x38] sm:$0xff] %v611
    %628 = vst [vmem:[%s7 + $0x40] sm:$0xff] %v612
    %629 = vst [vmem:[%s7 + $0x48] sm:$0xff] %v613
    %630 = vst [vmem:[%s7 + $0x50] sm:$0xff] %v614
    %631 = vst [vmem:[%s7 + $0x58] sm:$0xff] %v615
    %632 = vst [vmem:[%s7 + $0x60] sm:$0xff] %v616
    %633 = vst [vmem:[%s7 + $0x68] sm:$0xff] %v617
    %634 = vst [vmem:[%s7 + $0x70] sm:$0xff] %v618
    %635 = vst [vmem:[%s7 + $0x78] sm:$0xff] %v619
  $region37: #{aggregator_forward.1} parent=0 // pred_fallthru
    _
  // Predicated region
  $region38: #{aggregator_forward.1} parent=0 // pred_check
    _
  $region39: #{aggregator_forward.1} parent=0 // pred_check_branch
    %637 = sbr.rel (0) target = $region41
  $region40: #{aggregator_forward.1} parent=0 // pred_region
    _
  $region41: #{aggregator_forward.1} parent=0 // pred_fallthru
    _
  // Predicated region
  $region42: #{aggregator_forward.1} parent=0 // pred_check
    _
  $region43: #{aggregator_forward.1} parent=0 // pred_check_branch
    %639 = sbr.rel (0) target = $region45
  $region44: #{aggregator_forward.1} parent=0 // pred_region
    _
  $region45: #{aggregator_forward.1} parent=0 // pred_fallthru
    _

</llo_original>
